<compile_context>
chip_gen: v7x
topology: tpu7x:2x2x1
jax: 0.10.0
libtpu: 0.0.40
codegen_flags: <defaults>
</compile_context>

<pallas_src>
import functools

import jax
import jax.numpy as jnp
from jax.experimental import pallas as pl
from jax.experimental.pallas import tpu as pltpu


# ---------------------------------------------------------------------------
# VMEM budgeting (generation aware, with a safe fallback).
# ---------------------------------------------------------------------------
def _vmem_budget_and_limit():
    """Returns (block_budget_bytes, vmem_limit_bytes)."""
    cap = None
    try:
        info = pltpu.get_tpu_info()
        cap = getattr(info, "vmem_capacity_bytes", None)
    except Exception:
        cap = None
    if cap is not None and cap >= 96 * 1024 * 1024:
        # v5e / v6e: 128 MiB physical VMEM -> bigger blocks, explicit limit.
        return 48 * 1024 * 1024, 64 * 1024 * 1024
    # v7x (64 MiB physical / 32 MiB scoped default) or unknown: conservative.
    return 20 * 1024 * 1024, 32 * 1024 * 1024


def _pick_hw_tile(hw, c, n_bufs, budget, bytes_per_elem=4, max_hw_tile=None):
    """Largest multiple-of-128 lane tile s.t. n_bufs * c * tile fits budget."""
    hw_ceil = ((hw + 127) // 128) * 128
    max_tile = budget // (n_bufs * c * bytes_per_elem)
    tile = max(128, (max_tile // 128) * 128)
    tile = min(tile, hw_ceil)
    if max_hw_tile is not None:
        tile = min(tile, max(128, (max_hw_tile // 128) * 128))
    return tile


# ---------------------------------------------------------------------------
# Kernels
# ---------------------------------------------------------------------------
def _fused_kernel(x_ref, w1_ref, w2_ref, o_ref, *, inv_hw):
    """Whole-slab SE: pool -> FC -> ReLU -> FC -> sigmoid -> scale.

    x_ref/o_ref: (1, C, HW)   w1_ref: (C, C_r)   w2_ref: (C_r, C)
    """
    x = x_ref[...]
    pooled = jnp.sum(x, axis=-1) * inv_hw                       # (1, C) true mean
    h = jnp.maximum(
        jnp.dot(pooled, w1_ref[...], preferred_element_type=jnp.float32), 0.0)
    gate = jax.nn.sigmoid(
        jnp.dot(h, w2_ref[...], preferred_element_type=jnp.float32))  # (1, C)
    o_ref[...] = (x * gate[:, :, None]).astype(o_ref.dtype)


def _make_pool_kernel(hw, hw_tile):
    """Streaming spatial-sum kernel; masks padded lanes of the final tile."""
    rem = hw % hw_tile  # static; 0 => every tile is full

    def pool_kernel(x_ref, sum_ref):
        k = pl.program_id(1)

        @pl.when(k == 0)
        def _():
            sum_ref[...] = jnp.zeros_like(sum_ref)

        x = x_ref[...]
        if rem == 0:
            sum_ref[...] += jnp.sum(x, axis=-1, keepdims=True)
        else:
            last = pl.num_programs(1) - 1

            @pl.when(k != last)
            def _():
                sum_ref[...] += jnp.sum(x, axis=-1, keepdims=True)

            @pl.when(k == last)
            def _():
                lane = jax.lax.broadcasted_iota(jnp.int32, x.shape, 2)
                xm = jnp.where(lane < rem, x, 0.0)
                sum_ref[...] += jnp.sum(xm, axis=-1, keepdims=True)

    return pool_kernel


def _scale_kernel(x_ref, g_ref, o_ref):
    """Elementwise channel gate: o = x * gate (gate broadcast over lanes)."""
    o_ref[...] = x_ref[...] * g_ref[...]


# ---------------------------------------------------------------------------
# Wrapper
# ---------------------------------------------------------------------------
@functools.partial(jax.jit, static_argnames=("force_streaming", "max_hw_tile"))
def se_attention(x_nchw, w1_t, w2_t, force_streaming=False, max_hw_tile=None):
    """x_nchw: (B, C, H, W) f32; w1_t: (C, C_r); w2_t: (C_r, C)."""
    B, C, H, W = x_nchw.shape
    HW = H * W
    C_r = w1_t.shape[1]
    x_flat = x_nchw.reshape(B, C, HW)
    fsize = jnp.dtype(jnp.float32).itemsize

    budget, vmem_limit = _vmem_budget_and_limit()

    # Bytes of VMEM blocks for the fused path (in + out slabs double-buffered
    # plus the tiny weights).
    fused_bytes = 4 * C * HW * fsize + 2 * 2 * C * C_r * fsize

    if (not force_streaming) and fused_bytes <= budget:
        # ---- Fused single pass: one read + one write of x. ----
        out_flat = pl.pallas_call(
            functools.partial(_fused_kernel, inv_hw=1.0 / HW),
            out_shape=jax.ShapeDtypeStruct((B, C, HW), jnp.float32),
            grid=(B,),
            in_specs=[
                pl.BlockSpec((1, C, HW), lambda b: (b, 0, 0)),
                pl.BlockSpec((C, C_r), lambda b: (0, 0)),
                pl.BlockSpec((C_r, C), lambda b: (0, 0)),
            ],
            out_specs=pl.BlockSpec((1, C, HW), lambda b: (b, 0, 0)),
            compiler_params=pltpu.CompilerParams(
                dimension_semantics=("parallel",),
                vmem_limit_bytes=vmem_limit),
            cost_estimate=pl.CostEstimate(
                flops=2 * B * C * HW + 4 * B * C * C_r,
                transcendentals=B * C,
                bytes_accessed=2 * B * C * HW * fsize),
        )(x_flat, w1_t, w2_t)
        return out_flat.reshape(B, C, H, W)

    # ---- Streaming two-pass path (slab too big for VMEM residency). ----
    # Pass 1: pooled spatial sum.  Only the input block is double-buffered
    # (output (1,C,1) is resident) -> pass 1 gets a 2x larger tile than pass 2.
    hw_tile1 = _pick_hw_tile(HW, C, n_bufs=2, budget=budget,
                             max_hw_tile=max_hw_tile)
    n1 = pl.cdiv(HW, hw_tile1)
    pooled = pl.pallas_call(
        _make_pool_kernel(HW, hw_tile1),
        out_shape=jax.ShapeDtypeStruct((B, C, 1), jnp.float32),
        grid=(B, n1),
        in_specs=[pl.BlockSpec((1, C, hw_tile1), lambda b, k: (b, 0, k))],
        out_specs=pl.BlockSpec((1, C, 1), lambda b, k: (b, 0, 0)),
        compiler_params=pltpu.CompilerParams(
            dimension_semantics=("parallel", "arbitrary"),
            vmem_limit_bytes=vmem_limit),
        cost_estimate=pl.CostEstimate(
            flops=B * C * HW,
            transcendentals=0,
            bytes_accessed=B * C * HW * fsize + B * C * fsize),
    )(x_flat)

    # Gate (tiny, ~zero FLOPs): mean-scale + FC -> ReLU -> FC -> sigmoid in XLA.
    y = pooled[:, :, 0] * (1.0 / HW)                       # true mean, (B, C)
    h = jnp.maximum(y @ w1_t, 0.0)                         # (B, C_r)
    gate = jax.nn.sigmoid(h @ w2_t).reshape(B, C, 1)       # (B, C, 1)

    # Pass 2: elementwise scale, fully parallel.  OOB lanes of the last
    # (possibly partial) block are dropped on write.
    hw_tile2 = _pick_hw_tile(HW, C, n_bufs=4, budget=budget,
                             max_hw_tile=max_hw_tile)
    n2 = pl.cdiv(HW, hw_tile2)
    out_flat = pl.pallas_call(
        _scale_kernel,
        out_shape=jax.ShapeDtypeStruct((B, C, HW), jnp.float32),
        grid=(B, n2),
        in_specs=[
            pl.BlockSpec((1, C, hw_tile2), lambda b, k: (b, 0, k)),
            pl.BlockSpec((1, C, 1), lambda b, k: (b, 0, 0)),
        ],
        out_specs=pl.BlockSpec((1, C, hw_tile2), lambda b, k: (b, 0, k)),
        compiler_params=pltpu.CompilerParams(
            dimension_semantics=("parallel", "parallel"),
            vmem_limit_bytes=vmem_limit),
        cost_estimate=pl.CostEstimate(
            flops=B * C * HW,
            transcendentals=0,
            bytes_accessed=2 * B * C * HW * fsize + B * C * fsize),
    )(x_flat, gate)

    return out_flat.reshape(B, C, H, W)


def se_attention_ref(x_nchw, w1_t, w2_t):
    """Pure-JAX reference matching the PyTorch forward."""
    y = jnp.mean(x_nchw, axis=(2, 3))                      # (B, C)
    h = jnp.maximum(y @ w1_t, 0.0)                         # (B, C_r)
    s = jax.nn.sigmoid(h @ w2_t)                           # (B, C)
    return x_nchw * s[:, :, None, None]


if __name__ == "__main__":
    # Module config: in_ch=16, reduction=8 -> hidden=2 (mirrors SEAttention.__init__).
    B, C, H, W = 2, 16, 16, 16
    reduction = 8
    C_r = C // reduction

    key = jax.random.PRNGKey(0)
    kx, k1, k2, kx2 = jax.random.split(key, 4)

    x = jax.random.normal(kx, (B, C, H, W), dtype=jnp.float32)
    # PyTorch Linear(in, out).weight is (out, in); store transposed so the
    # gate path does y @ W^T directly.
    w1_t = jax.random.normal(k1, (C, C_r), dtype=jnp.float32) * 0.1  # Linear(C, C_r).weight.T
    w2_t = jax.random.normal(k2, (C_r, C), dtype=jnp.float32) * 0.1  # Linear(C_r, C).weight.T

    # --- Fused path (default for small slabs). ---
    out = jax.block_until_ready(se_attention(x, w1_t, w2_t))
    ref = se_attention_ref(x, w1_t, w2_t)
    assert out.shape == (B, C, H, W)
    assert jnp.allclose(out, ref, atol=1e-5, rtol=1e-5), "fused path mismatch"

    # --- Streaming path with ragged HW (225) and a capped 128-lane tile so
    #     the cdiv grid + masked final partial tile are exercised. ---
    x2 = jax.random.normal(kx2, (B, C, 15, 15), dtype=jnp.float32)
    out2 = jax.block_until_ready(
        se_attention(x2, w1_t, w2_t, force_streaming=True, max_hw_tile=128))
    ref2 = se_attention_ref(x2, w1_t, w2_t)
    assert out2.shape == x2.shape
    assert jnp.allclose(out2, ref2, atol=1e-5, rtol=1e-5), "streaming path mismatch"

    print("KERNEL_OK")
</pallas_src>

<mosaic_0001>
module attributes {stable_mosaic.version = 11 : i64} {
  func.func @_fused_kernel(%arg0: i32, %arg1: memref<1x16x256xf32, #tpu.memory_space<vmem>>, %arg2: memref<16x2xf32, #tpu.memory_space<vmem>>, %arg3: memref<2x16xf32, #tpu.memory_space<vmem>>, %arg4: memref<1x16x256xf32, #tpu.memory_space<vmem>>) attributes {dimension_semantics = [#tpu.dimension_semantics<parallel>], iteration_bounds = array<i64: 2>, scalar_prefetch = 0 : i64, scratch_operands = 0 : i64, tpu.core_type = #tpu.core_type<tc>, window_params = [{transform_indices = @transform_0, window_bounds = array<i64: 1, 16, 256>}, {pipeline_mode = #tpu.pipeline_mode<synchronous>, transform_indices = @transform_1, window_bounds = array<i64: 16, 2>}, {pipeline_mode = #tpu.pipeline_mode<synchronous>, transform_indices = @transform_2, window_bounds = array<i64: 2, 16>}, {transform_indices = @transform_3, window_bounds = array<i64: 1, 16, 256>}]} {
    %c0 = arith.constant 0 : index
    %c0_0 = arith.constant 0 : index
    %c0_1 = arith.constant 0 : index
    %0 = vector.load %arg1[%c0, %c0_0, %c0_1] : memref<1x16x256xf32, #tpu.memory_space<vmem>>, vector<1x16x256xf32>
    %cst = arith.constant dense<0.000000e+00> : vector<1x16xf32>
    %1 = vector.multi_reduction <add>, %0, %cst [2] : vector<1x16x256xf32> to vector<1x16xf32>
    %cst_2 = arith.constant 3.906250e-03 : f32
    %2 = vector.broadcast %cst_2 : f32 to vector<1x16xf32>
    %3 = arith.mulf %1, %2 : vector<1x16xf32>
    %c0_3 = arith.constant 0 : index
    %c0_4 = arith.constant 0 : index
    %4 = vector.load %arg2[%c0_3, %c0_4] : memref<16x2xf32, #tpu.memory_space<vmem>>, vector<16x2xf32>
    %cst_5 = arith.constant dense<0.000000e+00> : vector<1x2xf32>
    %5 = tpu.matmul %3, %4, %cst_5 {dimension_numbers = #tpu.dot_dimension_numbers<[1], [0], [0], [1], [0, 0, 1, 1], [], []>} : vector<1x16xf32>, vector<16x2xf32>, vector<1x2xf32> -> vector<1x2xf32>
    %cst_6 = arith.constant 0.000000e+00 : f32
    %6 = vector.broadcast %cst_6 : f32 to vector<1x2xf32>
    %7 = arith.maximumf %5, %6 : vector<1x2xf32>
    %c0_7 = arith.constant 0 : index
    %c0_8 = arith.constant 0 : index
    %8 = vector.load %arg3[%c0_7, %c0_8] : memref<2x16xf32, #tpu.memory_space<vmem>>, vector<2x16xf32>
    %cst_9 = arith.constant dense<0.000000e+00> : vector<1x16xf32>
    %9 = tpu.matmul %7, %8, %cst_9 {dimension_numbers = #tpu.dot_dimension_numbers<[1], [0], [0], [1], [0, 0, 1, 1], [], []>} : vector<1x2xf32>, vector<2x16xf32>, vector<1x16xf32> -> vector<1x16xf32>
    %10 = arith.negf %9 : vector<1x16xf32>
    %11 = math.exp %10 : vector<1x16xf32>
    %cst_10 = arith.constant 1.000000e+00 : f32
    %12 = vector.broadcast %cst_10 : f32 to vector<1x16xf32>
    %13 = arith.addf %12, %11 : vector<1x16xf32>
    %14 = arith.divf %12, %13 : vector<1x16xf32>
    %15 = vector.shape_cast %14 : vector<1x16xf32> to vector<1x16x1xf32>
    %16 = vector.broadcast %15 : vector<1x16x1xf32> to vector<1x16x256xf32>
    %17 = arith.mulf %0, %16 : vector<1x16x256xf32>
    %c0_11 = arith.constant 0 : index
    %c0_12 = arith.constant 0 : index
    %c0_13 = arith.constant 0 : index
    %18 = vector.load %arg4[%c0_11, %c0_12, %c0_13] : memref<1x16x256xf32, #tpu.memory_space<vmem>>, vector<1x16x256xf32>
    tpu.vector_store %arg4[%c0_11, %c0_12, %c0_13], %17 {strides = array<i32>} : memref<1x16x256xf32, #tpu.memory_space<vmem>>, vector<1x16x256xf32>,
    return
  }
  func.func @transform_0(%arg0: i32) -> (i32, i32, i32) {
    %c0_i32 = arith.constant 0 : i32
    %c0_i32_0 = arith.constant 0 : i32
    %c0_i32_1 = arith.constant 0 : i32
    return %arg0, %c0_i32, %c0_i32_0 : i32, i32, i32
  }
  func.func @transform_1(%arg0: i32) -> (i32, i32) {
    %c0_i32 = arith.constant 0 : i32
    %c0_i32_0 = arith.constant 0 : i32
    %c0_i32_1 = arith.constant 0 : i32
    return %c0_i32, %c0_i32_0 : i32, i32
  }
  func.func @transform_2(%arg0: i32) -> (i32, i32) {
    %c0_i32 = arith.constant 0 : i32
    %c0_i32_0 = arith.constant 0 : i32
    %c0_i32_1 = arith.constant 0 : i32
    return %c0_i32, %c0_i32_0 : i32, i32
  }
  func.func @transform_3(%arg0: i32) -> (i32, i32, i32) {
    %c0_i32 = arith.constant 0 : i32
    %c0_i32_0 = arith.constant 0 : i32
    %c0_i32_1 = arith.constant 0 : i32
    return %arg0, %c0_i32, %c0_i32_0 : i32, i32, i32
  }
}

</mosaic_0001>

<llo_original>
// kernel: se_attention.1
$region0: #{se_attention.1}
  #allocation0 [shape = 'u32[]', space=smem, size = 0x4, offset = 0x4, fixed_abs, tag = 'smem constant byte address 0x4 - core index']
  #allocation1 [shape = 'u32[144,128]{1,0:T(1,128)}', space=vmem, size = 0x12000, scoped, tag = 'internal scratch']
  %s0 = inlined_call_operand.vmem [shape: f32[2,16,256], index: 0, kind: input, shape index: {}]
  %s1 = inlined_call_operand.vmem [shape: f32[16,2], index: 1, kind: input, shape index: {}]
  %s2 = inlined_call_operand.vmem [shape: f32[2,16], index: 2, kind: input, shape index: {}]
  %s3 = inlined_call_operand.vmem [shape: f32[2,16,256], index: 3, kind: output, shape index: {}]
  %s4 = sld [smem:[#allocation0]]
  $region45: #{se_attention.1} parent=0
    _
  %s6 = ssub.s32 1, %s4
  %s7 = scalar_select 0, %s6, %s4
  loop: start=0, step=1, limit=4
  $region2: #{se_attention.1} parent=0 // loop_pre_header
    _
  $region3: #{se_attention.1} parent=0 // loop_header
    %s9 = sphi 0, %s13
    %p10 = scmp.ge.s32.totalorder %s9, 4
    %s19 = sphi 0, %s21
    %s22 = sphi 0, %s19
    %s23 = sphi 0, %s22
    %s39 = sphi 0, %s23
    %s43 = sphi 0, %s43
    %s45 = sphi 0, %s43
    %s46 = sphi 0, %s45
    %s60 = sphi 0, %s46
    %s64 = sphi 0, %s64
    %s66 = sphi 0, %s64
    %s67 = sphi 0, %s66
    %s81 = sphi 0, %s67
    %s87 = sphi 0, %s89
    %s90 = sphi 0, %s87
    %s91 = sphi 0, %s90
    %s107 = sphi 0, %s91
  $region4: #{se_attention.1} parent=0 // loop_header_branch
    %12 = sbr.rel (%p10) target = $region8
  $region5: #{se_attention.1} parent=0 // loop_body
    %s14 = ssub.s32 %s9, 1
    %s15 = ssub.s32 %s9, 2
    %s16 = sadd.s32 %s9, 1
    %s17 = ssub.s32 %s9, %s16
    %p18 = scmp.eq.s32.totalorder %s17, 0
    %s20 = sadd.s32 %s19, 1
    %s21 = scalar_select %p18, %s19, %s20
    %p24 = pneg %p18
    %p25 = scmp.eq.s32.totalorder %s9, 1
    %p26 = por %p24, %p25
    %p27 = scmp.ne.s32.totalorder %s19, %s22
    %p28 = scmp.eq.s32.totalorder %s9, 0
    %p29 = por %p27, %p28
    %p30 = scmp.ne.s32.totalorder %s19, %s22
    %p31 = scmp.eq.s32.totalorder %s14, 1
    %p32 = por %p30, %p31
    %p33 = scmp.ne.s32.totalorder %s22, %s23
    %p34 = scmp.eq.s32.totalorder %s14, 0
    %p35 = por %p33, %p34
    %p36 = scmp.ne.s32.totalorder %s22, %s23
    %p37 = scmp.eq.s32.totalorder %s15, 1
    %p38 = por %p36, %p37
    %p40 = scmp.ne.s32.totalorder %s23, %s39
    %p41 = scmp.eq.s32.totalorder %s15, 0
    %p42 = por %p40, %p41
    %s44 = sadd.s32 %s43, 1
    %p47 = scmp.eq.s32.totalorder %s9, 1
    %p48 = scmp.ne.s32.totalorder %s43, %s45
    %p49 = scmp.eq.s32.totalorder %s9, 0
    %p50 = por %p48, %p49
    %p51 = scmp.ne.s32.totalorder %s43, %s45
    %p52 = scmp.eq.s32.totalorder %s14, 1
    %p53 = por %p51, %p52
    %p54 = scmp.ne.s32.totalorder %s45, %s46
    %p55 = scmp.eq.s32.totalorder %s14, 0
    %p56 = por %p54, %p55
    %p57 = scmp.ne.s32.totalorder %s45, %s46
    %p58 = scmp.eq.s32.totalorder %s15, 1
    %p59 = por %p57, %p58
    %p61 = scmp.ne.s32.totalorder %s46, %s60
    %p62 = scmp.eq.s32.totalorder %s15, 0
    %p63 = por %p61, %p62
    %s65 = sadd.s32 %s64, 1
    %p68 = scmp.eq.s32.totalorder %s9, 1
    %p69 = scmp.ne.s32.totalorder %s64, %s66
    %p70 = scmp.eq.s32.totalorder %s9, 0
    %p71 = por %p69, %p70
    %p72 = scmp.ne.s32.totalorder %s64, %s66
    %p73 = scmp.eq.s32.totalorder %s14, 1
    %p74 = por %p72, %p73
    %p75 = scmp.ne.s32.totalorder %s66, %s67
    %p76 = scmp.eq.s32.totalorder %s14, 0
    %p77 = por %p75, %p76
    %p78 = scmp.ne.s32.totalorder %s66, %s67
    %p79 = scmp.eq.s32.totalorder %s15, 1
    %p80 = por %p78, %p79
    %p82 = scmp.ne.s32.totalorder %s67, %s81
    %p83 = scmp.eq.s32.totalorder %s15, 0
    %p84 = por %p82, %p83
    %s85 = ssub.s32 %s9, %s16
    %p86 = scmp.eq.s32.totalorder %s85, 0
    %s88 = sadd.s32 %s87, 1
    %s89 = scalar_select %p86, %s87, %s88
    %p92 = pneg %p86
    %p93 = scmp.eq.s32.totalorder %s9, 1
    %p94 = por %p92, %p93
    %p95 = scmp.ne.s32.totalorder %s87, %s90
    %p96 = scmp.eq.s32.totalorder %s9, 0
    %p97 = por %p95, %p96
    %p98 = scmp.ne.s32.totalorder %s87, %s90
    %p99 = scmp.eq.s32.totalorder %s14, 1
    %p100 = por %p98, %p99
    %p101 = scmp.ne.s32.totalorder %s90, %s91
    %p102 = scmp.eq.s32.totalorder %s14, 0
    %p103 = por %p101, %p102
    %p104 = scmp.ne.s32.totalorder %s90, %s91
    %p105 = scmp.eq.s32.totalorder %s15, 1
    %p106 = por %p104, %p105
    %p108 = scmp.ne.s32.totalorder %s91, %s107
    %p109 = scmp.eq.s32.totalorder %s15, 0
    %p110 = por %p108, %p109
    %p111 = scmp.le.s32.totalorder 1, %s9
    %p112 = scmp.lt.s32.totalorder %s9, 3
    %p113 = pnand %p111, %p112
    %p114 = pneg %p113
    // Predicated region
    $region9: #{se_attention.1} parent=5 // pred_check
      _
    $region10: #{se_attention.1} parent=5 // pred_check_branch
      %116 = sbr.rel (%p113) target = $region12
    $region11: #{se_attention.1} parent=5 // pred_region
      %s117 = ssub.s32 %s9, 1
      // Predicated region
      $region13: #{se_attention.1} parent=11 // pred_check
        %p118 = pneg %p56
      $region14: #{se_attention.1} parent=11 // pred_check_branch
        %120 = sbr.rel (%p118) target = $region16
      $region15: #{se_attention.1} parent=11 // pred_region
        _
      $region16: #{se_attention.1} parent=11 // pred_fallthru
        _
      // Predicated region
      $region17: #{se_attention.1} parent=11 // pred_check
        %p121 = pneg %p77
      $region18: #{se_attention.1} parent=11 // pred_check_branch
        %123 = sbr.rel (%p121) target = $region20
      $region19: #{se_attention.1} parent=11 // pred_region
        _
      $region20: #{se_attention.1} parent=11 // pred_fallthru
        _
    $region12: #{se_attention.1} parent=5 // pred_fallthru
      _
    %p124 = scmp.lt.s32.totalorder %s9, 2
    // Predicated region
    $region21: #{se_attention.1} parent=5 // pred_check
      %p125 = pneg %p124
    $region22: #{se_attention.1} parent=5 // pred_check_branch
      %127 = sbr.rel (%p125) target = $region24
    $region23: #{se_attention.1} parent=5 // pred_region
      // Predicated region
      $region25: #{se_attention.1} parent=23 // pred_check
        %p128 = pneg %p29
      $region26: #{se_attention.1} parent=23 // pred_check_branch
        %130 = sbr.rel (%p128) target = $region28
      $region27: #{se_attention.1} parent=23 // pred_region
        %p131 = scmp.lt.s32.totalorder %s9, 1
        %s132 = scalar_select %p131, %s9, 1
        %s133 = smul.addr %s132, 4
        %s134 = smul.addr %s133, 8
        %s135 = scalar_lea.vmem %s0, %s134
      $region28: #{se_attention.1} parent=23 // pred_fallthru
        _
    $region24: #{se_attention.1} parent=5 // pred_fallthru
      _
    %p136 = scmp.le.s32.totalorder 1, %s9
    %p137 = scmp.lt.s32.totalorder %s9, 3
    %p138 = pnand %p136, %p137
    %p139 = pneg %p138
    // Predicated region
    $region29: #{se_attention.1} parent=5 // pred_check
      _
    $region30: #{se_attention.1} parent=5 // pred_check_branch
      %141 = sbr.rel (%p138) target = $region32
    $region31: #{se_attention.1} parent=5 // pred_region
      %s142 = ssub.s32 %s9, 1
      %p143 = scmp.lt.s32.totalorder %s14, 1
      %s144 = scalar_select %p143, %s14, 1
      %s145 = smul.addr %s144, 4
      %s146 = smul.addr %s145, 8
      %s147 = scalar_lea.vmem %s0, %s146
      %p148 = pneg %p35
      %p149 = pneg %p32
      %p150 = pneg %p56
      %p151 = pneg %p53
      %p152 = pneg %p77
      %p153 = pneg %p74
      %p154 = pneg %p103
      %p155 = pneg %p100
      %p156 = scmp.lt.s32.totalorder %s14, 1
      %s157 = scalar_select %p156, %s14, 1
      %s158 = smul.addr %s157, 4
      %s159 = smul.addr %s158, 8
      %s160 = scalar_lea.vmem %s3, %s159
      %p161 = scmp.lt.s32.totalorder %s14, 1
      %s162 = scalar_select %p161, %s14, 1
      %s163 = smul.addr %s162, 4
      %s164 = smul.addr %s163, 8
      %s165 = scalar_lea.vmem %s0, %s164
      %p166 = scmp.lt.s32.totalorder %s14, 1
      %s167 = scalar_select %p166, %s14, 1
      %s168 = smul.addr %s167, 4
      %s169 = smul.addr %s168, 8
      %s170 = scalar_lea.vmem %s3, %s169
      %v171 = vld [vmem:[%s165] sm:$0xff]
      %v172 = vld [vmem:[%s165 + $0x8] sm:$0xff]
      %v173 = vld [vmem:[%s165 + $0x10] sm:$0xff]
      %v174 = vld [vmem:[%s165 + $0x18] sm:$0xff]
      %v175 = vadd.f32 %v171, %v172
      %176 = vadd.xlane.f32.xlu0 %v175
      %v177 = vpop.xlane.xlu0 %176
      %v178 = vadd.f32 %v173, %v174
      %179 = vadd.xlane.f32.xlu0 %v178
      %v180 = vpop.xlane.xlu0 %179
      %v181 = vmul.f32 %v177, 0.00390625
      %v182 = vmul.f32 %v180, 0.00390625
      %v183 = vld [vmem:[%s1] sm:$0xff]
      %v184 = vld [vmem:[%s1 + $0x8] sm:$0xff]
      %v187 = vlaneseq
      %v188 = vand.u32 %v187, 127
      %v189 = vlaneseq
      %v190 = vshrl.u32 %v189, 7
      %v191 = vsub.s32 %v188, %v190
      %v192 = vrot.slane %v181, %v191
      %v193 = vadd.s32 %v188, 4294967288
      %v194 = vlaneseq
      %v195 = vshrl.u32 %v194, 7
      %v196 = vsub.s32 %v193, %v195
      %v197 = vrot.slane %v182, %v196
      %vm198 = vcmask 130112
      %v199 = vsel %vm198, %v197, %v192
      %vm200 = vcmask 130048
      %v201 = vsel %vm200, %v199, 0
      %203 = vmatprep.subr.mxu0 0.0
      %204 = vmatpush1.msra.mxu0 %v183
      %205 = vmatprep.subr.mxu0 0.0
      %206 = vmatpush1.msra.mxu0 %v184
      %207 = vmatprep.subr.mxu0 0.0
      %208 = vmatpush1.msra.mxu0 0.0
      %209 = vmatprep.subr.mxu0 0.0
      %210 = vmatpush1.msra.mxu0 0.0
      %211 = vmatprep.subr.mxu0 0.0
      %212 = vmatpush1.msra.mxu0 0.0
      %213 = vmatprep.subr.mxu0 0.0
      %214 = vmatpush1.msra.mxu0 0.0
      %215 = vmatprep.subr.mxu0 0.0
      %216 = vmatpush1.msra.mxu0 0.0
      %217 = vmatprep.subr.mxu0 0.0
      %218 = vmatpush1.msra.mxu0 0.0
      %219 = vmatprep.subr.mxu0 0.0
      %220 = vmatpush1.msra.mxu0 0.0
      %221 = vmatprep.subr.mxu0 0.0
      %222 = vmatpush1.msra.mxu0 0.0
      %223 = vmatprep.subr.mxu0 0.0
      %224 = vmatpush1.msra.mxu0 0.0
      %225 = vmatprep.subr.mxu0 0.0
      %226 = vmatpush1.msra.mxu0 0.0
      %227 = vmatprep.subr.mxu0 0.0
      %228 = vmatpush1.msra.mxu0 0.0
      %229 = vmatprep.subr.mxu0 0.0
      %230 = vmatpush1.msra.mxu0 0.0
      %231 = vmatprep.subr.mxu0 0.0
      %232 = vmatpush1.msra.mxu0 0.0
      %233 = vmatprep.subr.mxu0 0.0
      %234 = vmatpush1.msra.mxu0 0.0
      %235 = vmatprep.subr.mxu0 0.0
      %236 = vmatpush1.msra.mxu0 0.0
      %237 = vmatprep.subr.mxu0 0.0
      %238 = vmatpush1.msra.mxu0 0.0
      %239 = vmatprep.subr.mxu0 0.0
      %240 = vmatpush1.msra.mxu0 0.0
      %241 = vmatprep.subr.mxu0 0.0
      %242 = vmatpush1.msra.mxu0 0.0
      %243 = vmatprep.subr.mxu0 0.0
      %244 = vmatpush1.msra.mxu0 0.0
      %245 = vmatprep.subr.mxu0 0.0
      %246 = vmatpush1.msra.mxu0 0.0
      %247 = vmatprep.subr.mxu0 0.0
      %248 = vmatpush1.msra.mxu0 0.0
      %249 = vmatprep.subr.mxu0 0.0
      %250 = vmatpush1.msra.mxu0 0.0
      %251 = vmatprep.subr.mxu0 0.0
      %252 = vmatpush1.msra.mxu0 0.0
      %253 = vmatprep.subr.mxu0 0.0
      %254 = vmatpush1.msra.mxu0 0.0
      %255 = vmatprep.subr.mxu0 0.0
      %256 = vmatpush1.msra.mxu0 0.0
      %257 = vmatprep.subr.mxu0 0.0
      %258 = vmatpush1.msra.mxu0 0.0
      %259 = vmatprep.subr.mxu0 0.0
      %260 = vmatpush1.msra.mxu0 0.0
      %261 = vmatprep.subr.mxu0 0.0
      %262 = vmatpush1.msra.mxu0 0.0
      %263 = vmatprep.subr.mxu0 0.0
      %264 = vmatpush1.msra.mxu0 0.0
      %265 = vmatprep.subr.mxu0 0.0
      %266 = vmatpush1.msra.mxu0 0.0
      %267 = vmatprep.mubr.f32.mxu0 0.0
      %268 = vmatmul.mubr.f32.gmra.mrb[0].mxu0 %v201
      %v269 = vpop.f32.mrb[0].mxu0
      %v270 = vadd.f32 0.0, %v269
      %v271 = vpop.f32.mrb[0].mxu0
      %272 = vdwg.mxu0
      %v273 = vmax.f32 %v270, 0.0
      %v274 = vld [vmem:[%s2] sm:$0x3]
      %vm275 = vcmask 15360
      %v277 = vsel %vm275, %v273, 0
      %vm279 = vcmask 1041408
      %v281 = vsel %vm279, %v274, 0
      %283 = vmatprep.subr.mxu0 0.0
      %284 = vmatpush1.msra.mxu0 %v281
      %285 = vmatprep.subr.mxu0 0.0
      %286 = vmatpush1.msra.mxu0 0.0
      %287 = vmatprep.subr.mxu0 0.0
      %288 = vmatpush1.msra.mxu0 0.0
      %289 = vmatprep.subr.mxu0 0.0
      %290 = vmatpush1.msra.mxu0 0.0
      %291 = vmatprep.subr.mxu0 0.0
      %292 = vmatpush1.msra.mxu0 0.0
      %293 = vmatprep.subr.mxu0 0.0
      %294 = vmatpush1.msra.mxu0 0.0
      %295 = vmatprep.subr.mxu0 0.0
      %296 = vmatpush1.msra.mxu0 0.0
      %297 = vmatprep.subr.mxu0 0.0
      %298 = vmatpush1.msra.mxu0 0.0
      %299 = vmatprep.subr.mxu0 0.0
      %300 = vmatpush1.msra.mxu0 0.0
      %301 = vmatprep.subr.mxu0 0.0
      %302 = vmatpush1.msra.mxu0 0.0
      %303 = vmatprep.subr.mxu0 0.0
      %304 = vmatpush1.msra.mxu0 0.0
      %305 = vmatprep.subr.mxu0 0.0
      %306 = vmatpush1.msra.mxu0 0.0
      %307 = vmatprep.subr.mxu0 0.0
      %308 = vmatpush1.msra.mxu0 0.0
      %309 = vmatprep.subr.mxu0 0.0
      %310 = vmatpush1.msra.mxu0 0.0
      %311 = vmatprep.subr.mxu0 0.0
      %312 = vmatpush1.msra.mxu0 0.0
      %313 = vmatprep.subr.mxu0 0.0
      %314 = vmatpush1.msra.mxu0 0.0
      %315 = vmatprep.subr.mxu0 0.0
      %316 = vmatpush1.msra.mxu0 0.0
      %317 = vmatprep.subr.mxu0 0.0
      %318 = vmatpush1.msra.mxu0 0.0
      %319 = vmatprep.subr.mxu0 0.0
      %320 = vmatpush1.msra.mxu0 0.0
      %321 = vmatprep.subr.mxu0 0.0
      %322 = vmatpush1.msra.mxu0 0.0
      %323 = vmatprep.subr.mxu0 0.0
      %324 = vmatpush1.msra.mxu0 0.0
      %325 = vmatprep.subr.mxu0 0.0
      %326 = vmatpush1.msra.mxu0 0.0
      %327 = vmatprep.subr.mxu0 0.0
      %328 = vmatpush1.msra.mxu0 0.0
      %329 = vmatprep.subr.mxu0 0.0
      %330 = vmatpush1.msra.mxu0 0.0
      %331 = vmatprep.subr.mxu0 0.0
      %332 = vmatpush1.msra.mxu0 0.0
      %333 = vmatprep.subr.mxu0 0.0
      %334 = vmatpush1.msra.mxu0 0.0
      %335 = vmatprep.subr.mxu0 0.0
      %336 = vmatpush1.msra.mxu0 0.0
      %337 = vmatprep.subr.mxu0 0.0
      %338 = vmatpush1.msra.mxu0 0.0
      %339 = vmatprep.subr.mxu0 0.0
      %340 = vmatpush1.msra.mxu0 0.0
      %341 = vmatprep.subr.mxu0 0.0
      %342 = vmatpush1.msra.mxu0 0.0
      %343 = vmatprep.subr.mxu0 0.0
      %344 = vmatpush1.msra.mxu0 0.0
      %345 = vmatprep.subr.mxu0 0.0
      %346 = vmatpush1.msra.mxu0 0.0
      %347 = vmatprep.mubr.f32.mxu0 0.0
      %348 = vmatmul.mubr.f32.gmra.mrb[0].mxu0 %v277
      %v349 = vpop.f32.mrb[0].mxu0
      %v350 = vadd.f32 0.0, %v349
      %v351 = vpop.f32.mrb[0].mxu0
      %352 = vdwg.mxu0
      %v353 = vxor.u32 %v350, 2147483648
      %v354 = vmul.f32 %v353, 1.442695
      %v355 = vpow.pop %v354
      %v356 = vadd.f32 %v355, 1.0
      %v357 = vrcp.pop %v356
      %v358 = vmul.f32 1.0, %v357
      %v359 = vlaneseq
      %v360 = vshrl.u32 %v359, 7
      %v361 = vsub.s32 0, %v360
      %v362 = vrot.slane %v358, %v361
      %364 = vbcast.lane.b32.xlu0 %v362, 256
      %v365 = vpop.permute.xlu0 %364
      %s367 = sor.u32 256, 8
      %368 = vbcast.lane.b32.xlu0 %v362, %s367
      %v369 = vpop.permute.xlu0 %368
      %v370 = vmul.f32 %v171, %v365
      %v371 = vmul.f32 %v172, %v365
      %v372 = vmul.f32 %v173, %v369
      %v373 = vmul.f32 %v174, %v369
      %374 = vst [vmem:[%s170] sm:$0xff] %v370
      %375 = vst [vmem:[%s170 + $0x8] sm:$0xff] %v371
      %376 = vst [vmem:[%s170 + $0x10] sm:$0xff] %v372
      %377 = vst [vmem:[%s170 + $0x18] sm:$0xff] %v373
      %p378 = scmp.lt.s32.totalorder %s14, 1
      %s379 = scalar_select %p378, %s14, 1
      %s380 = smul.addr %s379, 4
      %s381 = smul.addr %s380, 8
      %s382 = scalar_lea.vmem %s3, %s381
      // Predicated region
      $region33: #{se_attention.1} parent=31 // pred_check
        %p383 = pneg %p100
      $region34: #{se_attention.1} parent=31 // pred_check_branch
        %385 = sbr.rel (%p383) target = $region36
      $region35: #{se_attention.1} parent=31 // pred_region
        _
      $region36: #{se_attention.1} parent=31 // pred_fallthru
        _
    $region32: #{se_attention.1} parent=5 // pred_fallthru
      _
    %p386 = scmp.le.s32.totalorder 2, %s9
    // Predicated region
    $region37: #{se_attention.1} parent=5 // pred_check
      %p387 = pneg %p386
    $region38: #{se_attention.1} parent=5 // pred_check_branch
      %389 = sbr.rel (%p387) target = $region40
    $region39: #{se_attention.1} parent=5 // pred_region
      %s390 = ssub.s32 %s9, 2
      // Predicated region
      $region41: #{se_attention.1} parent=39 // pred_check
        %p391 = pneg %p106
      $region42: #{se_attention.1} parent=39 // pred_check_branch
        %393 = sbr.rel (%p391) target = $region44
      $region43: #{se_attention.1} parent=39 // pred_region
        %p394 = scmp.lt.s32.totalorder %s15, 1
        %s395 = scalar_select %p394, %s15, 1
        %s396 = smul.addr %s395, 4
        %s397 = smul.addr %s396, 8
        %s398 = scalar_lea.vmem %s3, %s397
      $region44: #{se_attention.1} parent=39 // pred_fallthru
        _
    $region40: #{se_attention.1} parent=5 // pred_fallthru
      _
  $region6: #{se_attention.1} parent=0 // loop_footer
    %s13 = sadd.s32 1, %s9
  $region7: #{se_attention.1} parent=0 // loop_footer_branch
    %8 = sbr.rel target = $region3
  $region8: #{se_attention.1} parent=0 // loop_exit
    _

</llo_original>
